<compile_context>
chip_gen: v5e
topology: v5e:2x2
jax: 0.10.0
libtpu: 0.0.40
codegen_flags: <defaults>
</compile_context>

<pallas_src>
import functools
import math

import jax
import jax.numpy as jnp
from jax.experimental import pallas as pl
from jax.experimental.pallas import tpu as pltpu


# ------------------------------ global tuning --------------------------------

_TM_CAP = 1024     # matmul row-tile cap (bf16 A-tile <= ~1.2 MB, double-buffered)


def _default_vmem_limit():
    # ~3/4 of physical VMEM: ~96 MiB on v5e/v6e (128 MiB), ~48 MiB on v7x (64 MiB).
    try:
        cap = int(pltpu.get_tpu_info().vmem_capacity_bytes)
    except Exception:
        cap = 64 * 1024 * 1024
    return min((cap * 3) // 4, 112 * 1024 * 1024)


_VMEM_LIMIT = _default_vmem_limit()


def _tile_m(m, cap=_TM_CAP):
    """Row-tile size: keep >= 2 (ideally >= 4) grid steps, cap the A-tile size."""
    if m <= 256:
        return m
    t = min(cap, max(256, -(-m // 4)))
    return -(-t // 8) * 8          # sublane aligned; ragged last block is masked


# ------------------------------ Pallas kernels -------------------------------

def _mm_bias_kernel(a_ref, w_ref, b_ref, o_ref):
    o_ref[...] = (jnp.dot(a_ref[...], w_ref[...],
                          preferred_element_type=jnp.float32)
                  + b_ref[...]).astype(o_ref.dtype)


def _mm_bias_add_kernel(a_ref, w_ref, b_ref, r_ref, o_ref):
    # conv + bias + residual add
    o_ref[...] = (jnp.dot(a_ref[...], w_ref[...],
                          preferred_element_type=jnp.float32)
                  + b_ref[...] + r_ref[...]).astype(o_ref.dtype)


def _mm_gate_kernel(a_ref, w_ref, b_ref, t_ref, gamma_ref, o_ref):
    # out = t + gamma * ((a @ w + b) * t)        (LWA out-proj + gamma2 gate)
    y = jnp.dot(a_ref[...], w_ref[...], preferred_element_type=jnp.float32) + b_ref[...]
    t = t_ref[...]
    o_ref[...] = (t + gamma_ref[...] * (y * t)).astype(o_ref.dtype)


def _mm_lka_gate_kernel(a_ref, w_ref, b_ref, s_ref, t_ref, gamma_ref, o_ref):
    # out = t + gamma * ((a @ w + b) * s * t)    (LKA pointwise, attn*x, gamma1 gate)
    y = jnp.dot(a_ref[...], w_ref[...], preferred_element_type=jnp.float32) + b_ref[...]
    t = t_ref[...]
    o_ref[...] = (t + gamma_ref[...] * (y * s_ref[...] * t)).astype(o_ref.dtype)


def _ln(x, g, b):
    mu = jnp.mean(x, axis=-1, keepdims=True)
    xc = x - mu
    var = jnp.mean(xc * xc, axis=-1, keepdims=True)
    return xc * jax.lax.rsqrt(var + 1e-5) * g + b


def _dyn_pair_ln_prelu_kernel(a_ref, w_ref, b_ref, g1_ref, be1_ref,
                              g2_ref, be2_ref, alpha_ref, o_ref, *, C):
    # Stage 1: same patches, two branch weights stacked along N = 2C; per-branch
    # LayerNorm + shared PReLU; one lane-dense (tm, 2C) store.
    y = jnp.dot(a_ref[0], w_ref[0], preferred_element_type=jnp.float32) + b_ref[0]
    z1 = _ln(y[:, :C], g1_ref[...], be1_ref[...])
    z2 = _ln(y[:, C:], g2_ref[...], be2_ref[...])
    z = jnp.concatenate([z1, z2], axis=-1)
    o_ref[0] = jnp.where(z >= 0.0, z, alpha_ref[...] * z).astype(o_ref.dtype)


def _dyn_pair2_ln_prelu_kernel(a1_ref, a2_ref, w1_ref, w2_ref, b_ref,
                               g1_ref, be1_ref, g2_ref, be2_ref,
                               alpha_ref, o_ref, *, C):
    # Stage 2: two independent K=9C dots (no block-diagonal zero padding),
    # per-branch LayerNorm + shared PReLU, one lane-dense (tm, 2C) store.
    y1 = jnp.dot(a1_ref[0], w1_ref[0], preferred_element_type=jnp.float32) + b_ref[0, :, :C]
    y2 = jnp.dot(a2_ref[0], w2_ref[0], preferred_element_type=jnp.float32) + b_ref[0, :, C:]
    z1 = _ln(y1, g1_ref[...], be1_ref[...])
    z2 = _ln(y2, g2_ref[...], be2_ref[...])
    z = jnp.concatenate([z1, z2], axis=-1)
    o_ref[0] = jnp.where(z >= 0.0, z, alpha_ref[...] * z).astype(o_ref.dtype)


def _dyn_fusion_kernel(a_ref, w_ref, b_ref, g_ref, be_ref, alpha_ref, r_ref, o_ref):
    # Fusion 1x1 dynamic conv + LayerNorm + PReLU + residual add, all fused.
    y = jnp.dot(a_ref[0], w_ref[0], preferred_element_type=jnp.float32) + b_ref[0]
    z = _ln(y, g_ref[...], be_ref[...])
    z = jnp.where(z >= 0.0, z, alpha_ref[...] * z)
    o_ref[0] = (z + r_ref[0]).astype(o_ref.dtype)


def _dwconv_kernel(x_ref, w_ref, b_ref, o_ref, *, kh, kw, dilation, Ho, Wo):
    # Depthwise conv. The sublane-misaligned W-offset slices are hoisted out of
    # the tap loop (kw relayouts instead of kh*kw); H offsets are cheap.
    x = x_ref[0]                                            # (Hp, Wp, C) bf16
    acc = None
    for j in range(kw):
        xj = x[:, j * dilation:j * dilation + Wo, :]
        for i in range(kh):
            tap = xj[i * dilation:i * dilation + Ho, :, :] * w_ref[i * kw + j]
            acc = tap if acc is None else acc + tap
    o_ref[0] = (acc + b_ref[0]).astype(o_ref.dtype)


def _winattn_kernel(qkv_ref, o_ref, *, inv_scale, L, C):
    x = qkv_ref[...]                                        # (G, Lp, 3C) bf16
    q = x[..., :C]
    k = x[..., C:2 * C]
    v = x[..., 2 * C:]
    s = jnp.einsum("gqc,gkc->gqk", q, k,
                   preferred_element_type=jnp.float32) * inv_scale
    Lp = s.shape[-1]
    if L < Lp:                                              # mask padded key columns
        col = jax.lax.broadcasted_iota(jnp.int32, s.shape, dimension=2)
        s = jnp.where(col < L, s, -1e30)
    s = s - jnp.max(s, axis=-1, keepdims=True)
    p = jnp.exp(s)
    p = p / jnp.sum(p, axis=-1, keepdims=True)
    o_ref[...] = jnp.einsum("gqk,gkc->gqc", p.astype(v.dtype), v,
                            preferred_element_type=jnp.float32).astype(o_ref.dtype)


# ------------------------------ call wrappers --------------------------------

def _row(v, n):
    """Broadcast a scalar parameter (gamma / PReLU alpha) to a (1, n) f32 row."""
    return jnp.broadcast_to(jnp.asarray(v, jnp.float32).reshape(1, 1), (1, n))


def mm_call(kernel, a, w, b, tiled_extras=(), row_extras=(), out_dtype=jnp.float32):
    """out[M, N] = epilogue(a[M,K] @ w[K,N] + b[N]); gridded (pipelined) over M."""
    M, K = a.shape
    N = w.shape[1]
    tm = _tile_m(M)
    in_specs = [
        pl.BlockSpec((tm, K), lambda i: (i, 0)),
        pl.BlockSpec((K, N), lambda i: (0, 0)),
        pl.BlockSpec((1, N), lambda i: (0, 0)),
    ]
    args = [a, w, jnp.asarray(b, jnp.float32).reshape(1, N)]
    for e in tiled_extras:                       # (M, n) epilogue tensors tiled with out
        in_specs.append(pl.BlockSpec((tm, e.shape[1]), lambda i: (i, 0)))
        args.append(e)
    for r in row_extras:                         # (1, n) broadcast rows (gamma / alpha)
        in_specs.append(pl.BlockSpec((1, r.shape[1]), lambda i: (0, 0)))
        args.append(r)
    return pl.pallas_call(
        kernel,
        out_shape=jax.ShapeDtypeStruct((M, N), out_dtype),
        grid=(pl.cdiv(M, tm),),
        in_specs=in_specs,
        out_specs=pl.BlockSpec((tm, N), lambda i: (i, 0)),
        compiler_params=pltpu.CompilerParams(
            dimension_semantics=("parallel",),
            vmem_limit_bytes=_VMEM_LIMIT),
    )(*args)


def dyn_pair_ln_prelu(patches, agg_w, agg_b, g1, b1, g2, b2, alpha, C):
    """Per-sample-weight matmul for a branch pair (N = 2C) + per-branch LN + PReLU."""
    B, M, K = patches.shape
    N = agg_w.shape[2]
    tm = _tile_m(M)
    return pl.pallas_call(
        functools.partial(_dyn_pair_ln_prelu_kernel, C=C),
        out_shape=jax.ShapeDtypeStruct((B, M, N), jnp.bfloat16),
        grid=(B, pl.cdiv(M, tm)),
        in_specs=[
            pl.BlockSpec((1, tm, K), lambda bi, mi: (bi, mi, 0)),
            pl.BlockSpec((1, K, N), lambda bi, mi: (bi, 0, 0)),   # weights resident over M
            pl.BlockSpec((1, 1, N), lambda bi, mi: (bi, 0, 0)),
            pl.BlockSpec((1, C), lambda bi, mi: (0, 0)),
            pl.BlockSpec((1, C), lambda bi, mi: (0, 0)),
            pl.BlockSpec((1, C), lambda bi, mi: (0, 0)),
            pl.BlockSpec((1, C), lambda bi, mi: (0, 0)),
            pl.BlockSpec((1, N), lambda bi, mi: (0, 0)),
        ],
        out_specs=pl.BlockSpec((1, tm, N), lambda bi, mi: (bi, mi, 0)),
        compiler_params=pltpu.CompilerParams(
            dimension_semantics=("parallel", "parallel"),
            vmem_limit_bytes=_VMEM_LIMIT),
    )(patches, agg_w, agg_b.reshape(B, 1, N),
      g1.reshape(1, C), b1.reshape(1, C), g2.reshape(1, C), b2.reshape(1, C),
      _row(alpha, N))


def dyn_pair2_ln_prelu(p1, p2, w1, w2, b_cat, g1, be1, g2, be2, alpha, C):
    """Stage-2: two independent dyn-conv matmuls fused into one lane-dense store."""
    B, M, K = p1.shape
    N = 2 * C
    tm = _tile_m(M)
    return pl.pallas_call(
        functools.partial(_dyn_pair2_ln_prelu_kernel, C=C),
        out_shape=jax.ShapeDtypeStruct((B, M, N), jnp.bfloat16),
        grid=(B, pl.cdiv(M, tm)),
        in_specs=[
            pl.BlockSpec((1, tm, K), lambda bi, mi: (bi, mi, 0)),
            pl.BlockSpec((1, tm, K), lambda bi, mi: (bi, mi, 0)),
            pl.BlockSpec((1, K, C), lambda bi, mi: (bi, 0, 0)),
            pl.BlockSpec((1, K, C), lambda bi, mi: (bi, 0, 0)),
            pl.BlockSpec((1, 1, N), lambda bi, mi: (bi, 0, 0)),
            pl.BlockSpec((1, C), lambda bi, mi: (0, 0)),
            pl.BlockSpec((1, C), lambda bi, mi: (0, 0)),
            pl.BlockSpec((1, C), lambda bi, mi: (0, 0)),
            pl.BlockSpec((1, C), lambda bi, mi: (0, 0)),
            pl.BlockSpec((1, N), lambda bi, mi: (0, 0)),
        ],
        out_specs=pl.BlockSpec((1, tm, N), lambda bi, mi: (bi, mi, 0)),
        compiler_params=pltpu.CompilerParams(
            dimension_semantics=("parallel", "parallel"),
            vmem_limit_bytes=_VMEM_LIMIT),
    )(p1, p2, w1, w2, b_cat.reshape(B, 1, N),
      g1.reshape(1, C), be1.reshape(1, C), g2.reshape(1, C), be2.reshape(1, C),
      _row(alpha, N))


def dyn_fusion_ln_prelu_res(x_cat, agg_w, agg_b, g, b, alpha, residual):
    B, M, K = x_cat.shape
    N = agg_w.shape[2]
    tm = _tile_m(M)
    return pl.pallas_call(
        _dyn_fusion_kernel,
        out_shape=jax.ShapeDtypeStruct((B, M, N), jnp.float32),
        grid=(B, pl.cdiv(M, tm)),
        in_specs=[
            pl.BlockSpec((1, tm, K), lambda bi, mi: (bi, mi, 0)),
            pl.BlockSpec((1, K, N), lambda bi, mi: (bi, 0, 0)),
            pl.BlockSpec((1, 1, N), lambda bi, mi: (bi, 0, 0)),
            pl.BlockSpec((1, N), lambda bi, mi: (0, 0)),
            pl.BlockSpec((1, N), lambda bi, mi: (0, 0)),
            pl.BlockSpec((1, N), lambda bi, mi: (0, 0)),
            pl.BlockSpec((1, tm, N), lambda bi, mi: (bi, mi, 0)),
        ],
        out_specs=pl.BlockSpec((1, tm, N), lambda bi, mi: (bi, mi, 0)),
        compiler_params=pltpu.CompilerParams(
            dimension_semantics=("parallel", "parallel"),
            vmem_limit_bytes=_VMEM_LIMIT),
    )(x_cat, agg_w, agg_b.reshape(B, 1, N),
      g.reshape(1, N), b.reshape(1, N), _row(alpha, N), residual)


def depthwise_conv(x_pad, w, b, kh, kw, dilation):
    """Depthwise conv (groups=C); torch weight layout (C, 1, kh, kw)."""
    B, Hp, Wp, C = x_pad.shape
    Ho = Hp - dilation * (kh - 1)
    Wo = Wp - dilation * (kw - 1)
    wt = jnp.transpose(w[:, 0, :, :], (1, 2, 0)).reshape(kh * kw, C).astype(jnp.float32)
    # TODO(synk): for very large resolutions, additionally tile H (with a
    # dilation*(kh-1)-row halo) so the padded slab stays inside v7x's 64 MiB VMEM.
    return pl.pallas_call(
        functools.partial(_dwconv_kernel, kh=kh, kw=kw, dilation=dilation,
                          Ho=Ho, Wo=Wo),
        out_shape=jax.ShapeDtypeStruct((B, Ho, Wo, C), jnp.bfloat16),
        grid=(B,),
        in_specs=[
            pl.BlockSpec((1, Hp, Wp, C), lambda i: (i, 0, 0, 0)),
            pl.BlockSpec((kh * kw, C), lambda i: (0, 0)),
            pl.BlockSpec((1, C), lambda i: (0, 0)),
        ],
        out_specs=pl.BlockSpec((1, Ho, Wo, C), lambda i: (i, 0, 0, 0)),
        compiler_params=pltpu.CompilerParams(
            dimension_semantics=("parallel",),
            vmem_limit_bytes=_VMEM_LIMIT),
    )(x_pad, wt, jnp.asarray(b, jnp.float32).reshape(1, C))


def window_attention(qkv, C, L):
    """qkv: (NW, Lp, 3C) with padded key columns L..Lp masked in-kernel."""
    NW, Lp, _ = qkv.shape
    G = min(8, NW)
    padw = (-NW) % G
    if padw:
        qkv = jnp.pad(qkv, ((0, padw), (0, 0), (0, 0)))
    NWt = NW + padw
    out = pl.pallas_call(
        functools.partial(_winattn_kernel, inv_scale=1.0 / math.sqrt(C), L=L, C=C),
        out_shape=jax.ShapeDtypeStruct((NWt, Lp, C), jnp.bfloat16),
        grid=(NWt // G,),
        in_specs=[pl.BlockSpec((G, Lp, 3 * C), lambda i: (i, 0, 0))],
        out_specs=pl.BlockSpec((G, Lp, C), lambda i: (i, 0, 0)),
        compiler_params=pltpu.CompilerParams(
            dimension_semantics=("parallel",),
            vmem_limit_bytes=_VMEM_LIMIT),
    )(qkv)
    return out[:NW]


# ----------------------------- plain-JAX glue --------------------------------

def reflect_pad_hw(x, pad):
    # TODO(synk): reflect padding stays XLA glue; folding it into the depthwise
    # kernels would save one activation pass per dwconv.
    return jnp.pad(x, ((0, 0), (pad, pad), (pad, pad), (0, 0)), mode="reflect")


def extract_patches(x_pad, kh, kw):
    """(B, Hp, Wp, C) -> (B, Ho, Wo, kh*kw*C) in (i, j, c) order (im2col glue)."""
    # TODO(synk): fuse im2col into the conv kernels (halo'd H-tiles + in-kernel tap
    # loop) to remove the ~9x HBM patch round-trip at large resolutions.
    B, Hp, Wp, C = x_pad.shape
    Ho = Hp - (kh - 1)
    Wo = Wp - (kw - 1)
    cols = []
    for i in range(kh):
        for j in range(kw):
            cols.append(x_pad[:, i:i + Ho, j:j + Wo, :])
    return jnp.concatenate(cols, axis=-1), Ho, Wo


def conv2d(x, w, b, kernel=_mm_bias_kernel, tiled_extras=(), padding=1,
           out_dtype=jnp.float32):
    """Standard zero-padded conv via im2col + tiled Pallas matmul (bf16 operands)."""
    B, H, W, Cin = x.shape
    Cout, _, kh, kw = w.shape
    xp = jnp.pad(x.astype(jnp.bfloat16),
                 ((0, 0), (padding, padding), (padding, padding), (0, 0)))
    patches, Ho, Wo = extract_patches(xp, kh, kw)
    wm = jnp.transpose(w, (2, 3, 1, 0)).reshape(kh * kw * Cin, Cout)
    out = mm_call(kernel,
                  patches.reshape(B * Ho * Wo, kh * kw * Cin),
                  wm.astype(jnp.bfloat16), b,
                  tiled_extras=tiled_extras, out_dtype=out_dtype)
    return out.reshape(B, Ho, Wo, Cout)


def pixel_shuffle(x, r):
    B, H, W, Crr = x.shape
    C = Crr // (r * r)
    x = x.reshape(B, H, W, C, r, r)
    x = jnp.transpose(x, (0, 1, 4, 2, 5, 3))
    return x.reshape(B, H * r, W * r, C)


def _dyn_attention(x, p, temperature=30.0):
    """Input-dependent mixing weights over K kernels (tiny; plain-JAX glue)."""
    pooled = jnp.mean(x.astype(jnp.float32), axis=(1, 2))            # (B, Cin)
    h = jnp.maximum(pooled @ p["attn_w1"] + p["attn_b1"], 0.0)
    scores = h @ p["attn_w2"] + p["attn_b2"]
    return jax.nn.softmax(scores / temperature, axis=1)              # (B, K)


def _dyn_aggregate(attn, p, kh, kw, cin):
    K, cout = p["weight"].shape[0], p["weight"].shape[1]
    wm = jnp.transpose(p["weight"], (0, 3, 4, 2, 1)).reshape(K, kh * kw * cin, cout)
    agg_w = jnp.einsum("bk,kxn->bxn", attn, wm)                      # (B, kh*kw*cin, cout)
    agg_b = attn @ p["bias"]                                         # (B, cout)
    return agg_w, agg_b


def _block_diag2(w):
    z = jnp.zeros_like(w)
    top = jnp.concatenate([w, z], axis=1)
    bot = jnp.concatenate([z, w], axis=1)
    return jnp.concatenate([top, bot], axis=0)                       # (2C, 2C)


# ------------------------------ fused modules --------------------------------

def lka_gate_pair(src, tgt, p, gamma):
    """Channel-stacked LKA for both branches in one pass.

    src = [x2 | x1], tgt = [x1 | x2]; returns [x1_hat | x2_hat] where
    x1_hat = x1 + gamma*(pw(dwd(dw(x2))) * x2 * x1) (and symmetrically).
    Depthwise convs run on 128 channels, the pointwise conv is a 128x128
    block-diagonal matmul -> one lane-dense gated store.
    """
    B, H, W, C2 = src.shape
    dw_w = jnp.concatenate([p["dw_w"], p["dw_w"]], axis=0)
    dw_b = jnp.concatenate([p["dw_b"], p["dw_b"]], axis=0)
    dwd_w = jnp.concatenate([p["dwd_w"], p["dwd_w"]], axis=0)
    dwd_b = jnp.concatenate([p["dwd_b"], p["dwd_b"]], axis=0)
    pw_w = _block_diag2(p["pw_w"])
    pw_b = jnp.concatenate([p["pw_b"], p["pw_b"]], axis=0)

    out1 = depthwise_conv(reflect_pad_hw(src, 2), dw_w, dw_b, 5, 5, 1)
    out2 = depthwise_conv(reflect_pad_hw(out1, 9), dwd_w, dwd_b, 7, 7, 3)
    M = B * H * W
    out = mm_call(_mm_lka_gate_kernel,
                  out2.reshape(M, C2),
                  pw_w.astype(jnp.bfloat16), pw_b,
                  tiled_extras=(src.reshape(M, C2), tgt.reshape(M, C2)),
                  row_extras=(_row(gamma, C2),),
                  out_dtype=jnp.bfloat16)
    return out.reshape(B, H, W, C2)


def lwa_gate(x_src, x_tgt, p, gamma, ws=7):
    """x_tgt + gamma * (LWA(x_src) * x_tgt); q/k/v stacked (N=3C), gate fused.

    Called once per SR block on the batch-stacked branch pair (2B samples).
    """
    B, H, W, C = x_src.shape
    pad_h = (-H) % ws
    pad_w = (-W) % ws
    xp = x_src
    if pad_h or pad_w:
        xp = jnp.pad(x_src, ((0, 0), (0, pad_h), (0, pad_w), (0, 0)), mode="reflect")
    Hp, Wp = H + pad_h, W + pad_w
    nh, nw = Hp // ws, Wp // ws
    L = ws * ws
    Lp = -(-L // 8) * 8                      # 49 -> 56 (sublane aligned seq dim)
    NW = B * nh * nw

    w_qkv = jnp.concatenate([p["q_w"], p["k_w"], p["v_w"]], axis=1)   # (C, 3C)
    b_qkv = jnp.concatenate([p["q_b"], p["k_b"], p["v_b"]], axis=0)   # (3C,)
    qkv = mm_call(_mm_bias_kernel,
                  xp.reshape(B * Hp * Wp, C).astype(jnp.bfloat16),
                  w_qkv.astype(jnp.bfloat16), b_qkv,
                  out_dtype=jnp.bfloat16)                             # (B*Hp*Wp, 3C)

    # TODO(synk): window partition / un-partition stay as XLA transposes (ws=7 is
    # not sublane aligned); the seq dim is padded to 56 so the attention kernel
    # itself uses aligned tiles.
    qkv = qkv.reshape(B, nh, ws, nw, ws, 3 * C)
    qkv = jnp.transpose(qkv, (0, 1, 3, 2, 4, 5)).reshape(NW, L, 3 * C)
    if Lp > L:
        qkv = jnp.pad(qkv, ((0, 0), (0, Lp - L), (0, 0)))
    outw = window_attention(qkv, C, L)                                # (NW, Lp, C)
    outw = outw[:, :L, :]

    out = outw.reshape(B, nh, nw, ws, ws, C)
    out = jnp.transpose(out, (0, 1, 3, 2, 4, 5)).reshape(B, Hp, Wp, C)
    out = out[:, :H, :W, :]
    M = B * H * W
    out = mm_call(_mm_gate_kernel,
                  out.reshape(M, C),
                  p["o_w"].astype(jnp.bfloat16), p["o_b"],
                  tiled_extras=(x_tgt.reshape(M, C).astype(jnp.bfloat16),),
                  row_extras=(_row(gamma, C),),
                  out_dtype=jnp.bfloat16)
    return out.reshape(B, H, W, C)


def sr_block(x, p, ws=7):
    B, H, W, C = x.shape
    residual = x                                                      # f32 residual path
    x_bf = x.astype(jnp.bfloat16)

    # -- stage 1: two dynamic 3x3 convs on the SAME padded input, N-stacked to 2C=128
    xp = reflect_pad_hw(x_bf, 1)
    a1 = _dyn_attention(xp, p["conv1_b1"])
    a2 = _dyn_attention(xp, p["conv1_b2"])
    w1, b1 = _dyn_aggregate(a1, p["conv1_b1"], 3, 3, C)
    w2, b2 = _dyn_aggregate(a2, p["conv1_b2"], 3, 3, C)
    agg_w = jnp.concatenate([w1, w2], axis=-1).astype(jnp.bfloat16)   # (B, 9C, 2C)
    agg_b = jnp.concatenate([b1, b2], axis=-1)                        # (B, 2C)
    patches, _, _ = extract_patches(xp, 3, 3)
    patches = patches.reshape(B, H * W, 9 * C)
    y = dyn_pair_ln_prelu(patches, agg_w, agg_b,
                          p["ln1_b1_g"], p["ln1_b1_b"],
                          p["ln1_b2_g"], p["ln1_b2_b"],
                          p["prelu"], C).reshape(B, H, W, 2 * C)      # [x1 | x2] bf16

    # -- LKA + gamma1 gate: both branches in one channel-stacked pass.
    src = jnp.concatenate([y[..., C:], y[..., :C]], axis=-1)          # [x2 | x1]
    xhat = lka_gate_pair(src, y, p["lka"], p["gamma1"])               # [x1_hat | x2_hat]
    x1_hat, x2_hat = xhat[..., :C], xhat[..., C:]

    # -- stage 2: two dynamic 3x3 convs on different inputs, fused into one kernel
    #    with two K=9C dots (no block-diagonal zero padding) and a 128-lane store.
    xp1 = reflect_pad_hw(x1_hat, 1)
    xp2 = reflect_pad_hw(x2_hat, 1)
    a1 = _dyn_attention(xp1, p["conv2_b1"])
    a2 = _dyn_attention(xp2, p["conv2_b2"])
    w1, b1 = _dyn_aggregate(a1, p["conv2_b1"], 3, 3, C)
    w2, b2 = _dyn_aggregate(a2, p["conv2_b2"], 3, 3, C)
    p1, _, _ = extract_patches(xp1, 3, 3)
    p2, _, _ = extract_patches(xp2, 3, 3)
    y2 = dyn_pair2_ln_prelu(p1.reshape(B, H * W, 9 * C),
                            p2.reshape(B, H * W, 9 * C),
                            w1.astype(jnp.bfloat16), w2.astype(jnp.bfloat16),
                            jnp.concatenate([b1, b2], axis=-1),
                            p["ln2_b1_g"], p["ln2_b1_b"],
                            p["ln2_b2_g"], p["ln2_b2_b"],
                            p["prelu"], C).reshape(B, H, W, 2 * C)
    x1_2, x2_2 = y2[..., :C], y2[..., C:]

    # -- LWA + gamma2 gate: both branches in one batch-stacked pass.
    src2 = jnp.concatenate([x2_2, x1_2], axis=0)                      # (2B, H, W, C)
    tgt2 = jnp.concatenate([x1_2, x2_2], axis=0)
    outw = lwa_gate(src2, tgt2, p["lwa"], p["gamma2"], ws)            # (2B, H, W, C)
    x1_2_hat, x2_2_hat = outw[:B], outw[B:]

    # -- fusion 1x1 dynamic conv + LayerNorm + PReLU + residual (fully fused)
    x_cat = jnp.concatenate([x1_2_hat, x2_2_hat], axis=-1)            # (B, H, W, 2C) bf16
    af = _dyn_attention(x_cat, p["conv_fusion"])
    wf, bf_ = _dyn_aggregate(af, p["conv_fusion"], 1, 1, 2 * C)       # (B, 2C, C)
    out = dyn_fusion_ln_prelu_res(
        x_cat.reshape(B, H * W, 2 * C),
        wf.astype(jnp.bfloat16), bf_,
        p["ln_f_g"], p["ln_f_b"], p["prelu"],
        residual.reshape(B, H * W, C))
    return out.reshape(B, H, W, C)


# ------------------------------ EDSR forward ----------------------------------

def edsr_forward(x_nchw, params):
    x = jnp.transpose(x_nchw, (0, 2, 3, 1)).astype(jnp.float32)       # NHWC
    mean = params["mean"].reshape(1, 1, 1, 3)
    out = (x - mean) * 255.0               # plain JAX: XLA fuses with the transpose

    out1 = conv2d(out, params["conv1_w"], params["conv1_b"])
    out = out1
    for bp in params["trunk"]:
        out = sr_block(out, bp)

    B, H, W, C = out.shape
    out = conv2d(out, params["conv2_w"], params["conv2_b"],
                 kernel=_mm_bias_add_kernel,
                 tiled_extras=(out1.reshape(B * H * W, C),))          # + out1 fused

    for up in params["upsampling"]:
        out = conv2d(out, up["w"], up["b"])
        out = pixel_shuffle(out, up["r"])

    out = conv2d(out, params["conv3_w"], params["conv3_b"])
    out = out / 255.0 + mean
    return jnp.transpose(out, (0, 3, 1, 2))                           # back to NCHW


# ------------------------------ parameter init --------------------------------

def _nrm(key, shape, scale=0.05):
    return jax.random.normal(key, shape, jnp.float32) * scale


def _init_dynconv(key, cin, cout, k, K=4, reduction=4):
    ks = jax.random.split(key, 4)
    attn_ch = max(cin // reduction, 1)
    return {
        "weight": _nrm(ks[0], (K, cout, cin, k, k)),
        "bias": _nrm(ks[1], (K, cout), 0.01),
        "attn_w1": _nrm(ks[2], (cin, attn_ch)),
        "attn_b1": jnp.zeros((attn_ch,), jnp.float32),
        "attn_w2": _nrm(ks[3], (attn_ch, K)),
        "attn_b2": jnp.zeros((K,), jnp.float32),
    }


def _init_lka(key, c):
    ks = jax.random.split(key, 3)
    return {
        "dw_w": _nrm(ks[0], (c, 1, 5, 5)), "dw_b": jnp.zeros((c,), jnp.float32),
        "dwd_w": _nrm(ks[1], (c, 1, 7, 7)), "dwd_b": jnp.zeros((c,), jnp.float32),
        "pw_w": _nrm(ks[2], (c, c)), "pw_b": jnp.zeros((c,), jnp.float32),
    }


def _init_lwa(key, c):
    ks = jax.random.split(key, 4)
    d = {}
    for name, kk in zip(["q", "k", "v", "o"], ks):
        d[name + "_w"] = _nrm(kk, (c, c))
        d[name + "_b"] = jnp.zeros((c,), jnp.float32)
    return d


def _init_srblock(key, c):
    ks = jax.random.split(key, 7)
    ones, zeros = jnp.ones((c,), jnp.float32), jnp.zeros((c,), jnp.float32)
    return {
        "conv1_b1": _init_dynconv(ks[0], c, c, 3),
        "conv1_b2": _init_dynconv(ks[1], c, c, 3),
        "conv2_b1": _init_dynconv(ks[2], c, c, 3),
        "conv2_b2": _init_dynconv(ks[3], c, c, 3),
        "conv_fusion": _init_dynconv(ks[4], 2 * c, c, 1),
        "ln1_b1_g": ones, "ln1_b1_b": zeros,
        "ln1_b2_g": ones, "ln1_b2_b": zeros,
        "ln2_b1_g": ones, "ln2_b1_b": zeros,
        "ln2_b2_g": ones, "ln2_b2_b": zeros,
        "ln_f_g": ones, "ln_f_b": zeros,
        "prelu": jnp.full((1,), 0.25, jnp.float32),
        "gamma1": jnp.ones((1,), jnp.float32),
        "gamma2": jnp.ones((1,), jnp.float32),
        "lka": _init_lka(ks[5], c),
        "lwa": _init_lwa(ks[6], c),
    }


def init_edsr_params(key, upscale_factor=2, channels=64, num_blocks=16):
    keys = jax.random.split(key, num_blocks + 5)
    p = {
        "mean": jnp.array([0.46889835596084595, 0.4489615261554718,
                           0.40343502163887024], jnp.float32),
        "conv1_w": _nrm(keys[0], (channels, 3, 3, 3)),
        "conv1_b": jnp.zeros((channels,), jnp.float32),
        "trunk": [_init_srblock(keys[1 + i], channels) for i in range(num_blocks)],
        "conv2_w": _nrm(keys[num_blocks + 1], (channels, channels, 3, 3)),
        "conv2_b": jnp.zeros((channels,), jnp.float32),
        "conv3_w": _nrm(keys[num_blocks + 3], (3, channels, 3, 3)),
        "conv3_b": jnp.zeros((3,), jnp.float32),
    }
    ups = []
    if upscale_factor in (2, 4):
        n_up = int(math.log(upscale_factor, 2))
        upk = jax.random.split(keys[num_blocks + 2], max(n_up, 1))
        for i in range(n_up):
            ups.append({"w": _nrm(upk[i], (channels * 4, channels, 3, 3)),
                        "b": jnp.zeros((channels * 4,), jnp.float32), "r": 2})
    elif upscale_factor == 3:
        ups.append({"w": _nrm(keys[num_blocks + 2], (channels * 9, channels, 3, 3)),
                    "b": jnp.zeros((channels * 9,), jnp.float32), "r": 3})
    p["upsampling"] = ups
    return p


# ----------------------------------- main --------------------------------------

if __name__ == "__main__":
    key = jax.random.PRNGKey(0)
    kx, kp = jax.random.split(key)
    upscale = 2
    # Input like a small RGB image batch (PyTorch NCHW convention).
    x = jax.random.uniform(kx, (2, 3, 16, 16), jnp.float32)
    params = init_edsr_params(kp, upscale_factor=upscale, channels=64, num_blocks=16)

    out = edsr_forward(x, params)
    out = jax.block_until_ready(out)
    assert out.shape == (2, 3, 16 * upscale, 16 * upscale), out.shape
    assert bool(jnp.all(jnp.isfinite(out)))
    print("KERNEL_OK")
</pallas_src>

<mosaic_0001>
module attributes {stable_mosaic.version = 11 : i64} {
  func.func @_mm_bias_kernel(%arg0: i32, %arg1: memref<256x27xbf16, #tpu.memory_space<vmem>>, %arg2: memref<27x64xbf16, #tpu.memory_space<vmem>>, %arg3: memref<1x64xf32, #tpu.memory_space<vmem>>, %arg4: memref<256x64xf32, #tpu.memory_space<vmem>>) attributes {dimension_semantics = [#tpu.dimension_semantics<parallel>], iteration_bounds = array<i64: 2>, scalar_prefetch = 0 : i64, scratch_operands = 0 : i64, tpu.core_type = #tpu.core_type<tc>, window_params = [{transform_indices = @transform_0, window_bounds = array<i64: 256, 27>}, {pipeline_mode = #tpu.pipeline_mode<synchronous>, transform_indices = @transform_1, window_bounds = array<i64: 27, 64>}, {pipeline_mode = #tpu.pipeline_mode<synchronous>, transform_indices = @transform_2, window_bounds = array<i64: 1, 64>}, {transform_indices = @transform_3, window_bounds = array<i64: 256, 64>}]} {
    %c0 = arith.constant 0 : index
    %c0_0 = arith.constant 0 : index
    %0 = vector.load %arg1[%c0, %c0_0] : memref<256x27xbf16, #tpu.memory_space<vmem>>, vector<256x27xbf16>
    %c0_1 = arith.constant 0 : index
    %c0_2 = arith.constant 0 : index
    %1 = vector.load %arg2[%c0_1, %c0_2] : memref<27x64xbf16, #tpu.memory_space<vmem>>, vector<27x64xbf16>
    %cst = arith.constant dense<0.000000e+00> : vector<256x64xf32>
    %2 = tpu.matmul %0, %1, %cst {dimension_numbers = #tpu.dot_dimension_numbers<[1], [0], [0], [1], [0, 0, 1, 1], [], []>} : vector<256x27xbf16>, vector<27x64xbf16>, vector<256x64xf32> -> vector<256x64xf32>
    %c0_3 = arith.constant 0 : index
    %c0_4 = arith.constant 0 : index
    %3 = vector.load %arg3[%c0_3, %c0_4] : memref<1x64xf32, #tpu.memory_space<vmem>>, vector<1x64xf32>
    %4 = vector.broadcast %3 : vector<1x64xf32> to vector<256x64xf32>
    %5 = arith.addf %2, %4 : vector<256x64xf32>
    %c0_5 = arith.constant 0 : index
    %c0_6 = arith.constant 0 : index
    %6 = vector.load %arg4[%c0_5, %c0_6] : memref<256x64xf32, #tpu.memory_space<vmem>>, vector<256x64xf32>
    tpu.vector_store %arg4[%c0_5, %c0_6], %5 {strides = array<i32>} : memref<256x64xf32, #tpu.memory_space<vmem>>, vector<256x64xf32>,
    return
  }
  func.func @transform_0(%arg0: i32) -> (i32, i32) {
    %c0_i32 = arith.constant 0 : i32
    %c0_i32_0 = arith.constant 0 : i32
    return %arg0, %c0_i32 : i32, i32
  }
  func.func @transform_1(%arg0: i32) -> (i32, i32) {
    %c0_i32 = arith.constant 0 : i32
    %c0_i32_0 = arith.constant 0 : i32
    %c0_i32_1 = arith.constant 0 : i32
    return %c0_i32, %c0_i32_0 : i32, i32
  }
  func.func @transform_2(%arg0: i32) -> (i32, i32) {
    %c0_i32 = arith.constant 0 : i32
    %c0_i32_0 = arith.constant 0 : i32
    %c0_i32_1 = arith.constant 0 : i32
    return %c0_i32, %c0_i32_0 : i32, i32
  }
  func.func @transform_3(%arg0: i32) -> (i32, i32) {
    %c0_i32 = arith.constant 0 : i32
    %c0_i32_0 = arith.constant 0 : i32
    return %arg0, %c0_i32 : i32, i32
  }
}

</mosaic_0001>

<llo_original>
// kernel: tpu_custom_call.1
$region0: #{tpu_custom_call.1}
  #allocation0 [shape = 'u32[]', space=smem, size = 0x4, offset = 0x4, fixed_abs, tag = 'smem constant byte address 0x4 - core index']
  #allocation1 [shape = 'u32[72,128]{1,0:T(1,128)}', space=vmem, size = 0x9000, scoped, tag = 'internal scratch']
  %s0 = inlined_call_operand.vmem [shape: bf16[512,27], index: 0, kind: input, shape index: {}]
  %s1 = inlined_call_operand.vmem [shape: bf16[27,64], index: 1, kind: input, shape index: {}]
  %s2 = inlined_call_operand.vmem [shape: f32[1,64], index: 2, kind: input, shape index: {}]
  %s3 = inlined_call_operand.vmem [shape: f32[512,64], index: 3, kind: output, shape index: {}]
  %s4 = sld [smem:[#allocation0]]
  $region45: #{tpu_custom_call.1} parent=0
    _
  %s6 = ssub.s32 1, %s4
  %s7 = scalar_select 0, %s6, %s4
  loop: start=0, step=1, limit=4
  $region2: #{tpu_custom_call.1} parent=0 // loop_pre_header
    _
  $region3: #{tpu_custom_call.1} parent=0 // loop_header
    %s9 = sphi 0, %s13
    %p10 = scmp.ge.s32.totalorder %s9, 4
    %s19 = sphi 0, %s21
    %s22 = sphi 0, %s19
    %s23 = sphi 0, %s22
    %s39 = sphi 0, %s23
    %s43 = sphi 0, %s43
    %s45 = sphi 0, %s43
    %s46 = sphi 0, %s45
    %s60 = sphi 0, %s46
    %s64 = sphi 0, %s64
    %s66 = sphi 0, %s64
    %s67 = sphi 0, %s66
    %s81 = sphi 0, %s67
    %s87 = sphi 0, %s89
    %s90 = sphi 0, %s87
    %s91 = sphi 0, %s90
    %s107 = sphi 0, %s91
  $region4: #{tpu_custom_call.1} parent=0 // loop_header_branch
    %12 = sbr.rel (%p10) target = $region8
  $region5: #{tpu_custom_call.1} parent=0 // loop_body
    %s14 = ssub.s32 %s9, 1
    %s15 = ssub.s32 %s9, 2
    %s16 = sadd.s32 %s9, 1
    %s17 = ssub.s32 %s9, %s16
    %p18 = scmp.eq.s32.totalorder %s17, 0
    %s20 = sadd.s32 %s19, 1
    %s21 = scalar_select %p18, %s19, %s20
    %p24 = pneg %p18
    %p25 = scmp.eq.s32.totalorder %s9, 1
    %p26 = por %p24, %p25
    %p27 = scmp.ne.s32.totalorder %s19, %s22
    %p28 = scmp.eq.s32.totalorder %s9, 0
    %p29 = por %p27, %p28
    %p30 = scmp.ne.s32.totalorder %s19, %s22
    %p31 = scmp.eq.s32.totalorder %s14, 1
    %p32 = por %p30, %p31
    %p33 = scmp.ne.s32.totalorder %s22, %s23
    %p34 = scmp.eq.s32.totalorder %s14, 0
    %p35 = por %p33, %p34
    %p36 = scmp.ne.s32.totalorder %s22, %s23
    %p37 = scmp.eq.s32.totalorder %s15, 1
    %p38 = por %p36, %p37
    %p40 = scmp.ne.s32.totalorder %s23, %s39
    %p41 = scmp.eq.s32.totalorder %s15, 0
    %p42 = por %p40, %p41
    %s44 = sadd.s32 %s43, 1
    %p47 = scmp.eq.s32.totalorder %s9, 1
    %p48 = scmp.ne.s32.totalorder %s43, %s45
    %p49 = scmp.eq.s32.totalorder %s9, 0
    %p50 = por %p48, %p49
    %p51 = scmp.ne.s32.totalorder %s43, %s45
    %p52 = scmp.eq.s32.totalorder %s14, 1
    %p53 = por %p51, %p52
    %p54 = scmp.ne.s32.totalorder %s45, %s46
    %p55 = scmp.eq.s32.totalorder %s14, 0
    %p56 = por %p54, %p55
    %p57 = scmp.ne.s32.totalorder %s45, %s46
    %p58 = scmp.eq.s32.totalorder %s15, 1
    %p59 = por %p57, %p58
    %p61 = scmp.ne.s32.totalorder %s46, %s60
    %p62 = scmp.eq.s32.totalorder %s15, 0
    %p63 = por %p61, %p62
    %s65 = sadd.s32 %s64, 1
    %p68 = scmp.eq.s32.totalorder %s9, 1
    %p69 = scmp.ne.s32.totalorder %s64, %s66
    %p70 = scmp.eq.s32.totalorder %s9, 0
    %p71 = por %p69, %p70
    %p72 = scmp.ne.s32.totalorder %s64, %s66
    %p73 = scmp.eq.s32.totalorder %s14, 1
    %p74 = por %p72, %p73
    %p75 = scmp.ne.s32.totalorder %s66, %s67
    %p76 = scmp.eq.s32.totalorder %s14, 0
    %p77 = por %p75, %p76
    %p78 = scmp.ne.s32.totalorder %s66, %s67
    %p79 = scmp.eq.s32.totalorder %s15, 1
    %p80 = por %p78, %p79
    %p82 = scmp.ne.s32.totalorder %s67, %s81
    %p83 = scmp.eq.s32.totalorder %s15, 0
    %p84 = por %p82, %p83
    %s85 = ssub.s32 %s9, %s16
    %p86 = scmp.eq.s32.totalorder %s85, 0
    %s88 = sadd.s32 %s87, 1
    %s89 = scalar_select %p86, %s87, %s88
    %p92 = pneg %p86
    %p93 = scmp.eq.s32.totalorder %s9, 1
    %p94 = por %p92, %p93
    %p95 = scmp.ne.s32.totalorder %s87, %s90
    %p96 = scmp.eq.s32.totalorder %s9, 0
    %p97 = por %p95, %p96
    %p98 = scmp.ne.s32.totalorder %s87, %s90
    %p99 = scmp.eq.s32.totalorder %s14, 1
    %p100 = por %p98, %p99
    %p101 = scmp.ne.s32.totalorder %s90, %s91
    %p102 = scmp.eq.s32.totalorder %s14, 0
    %p103 = por %p101, %p102
    %p104 = scmp.ne.s32.totalorder %s90, %s91
    %p105 = scmp.eq.s32.totalorder %s15, 1
    %p106 = por %p104, %p105
    %p108 = scmp.ne.s32.totalorder %s91, %s107
    %p109 = scmp.eq.s32.totalorder %s15, 0
    %p110 = por %p108, %p109
    %p111 = scmp.le.s32.totalorder 1, %s9
    %p112 = scmp.lt.s32.totalorder %s9, 3
    %p113 = pnand %p111, %p112
    %p114 = pneg %p113
    // Predicated region
    $region9: #{tpu_custom_call.1} parent=5 // pred_check
      _
    $region10: #{tpu_custom_call.1} parent=5 // pred_check_branch
      %116 = sbr.rel (%p113) target = $region12
    $region11: #{tpu_custom_call.1} parent=5 // pred_region
      %s117 = ssub.s32 %s9, 1
      // Predicated region
      $region13: #{tpu_custom_call.1} parent=11 // pred_check
        %p118 = pneg %p56
      $region14: #{tpu_custom_call.1} parent=11 // pred_check_branch
        %120 = sbr.rel (%p118) target = $region16
      $region15: #{tpu_custom_call.1} parent=11 // pred_region
        _
      $region16: #{tpu_custom_call.1} parent=11 // pred_fallthru
        _
      // Predicated region
      $region17: #{tpu_custom_call.1} parent=11 // pred_check
        %p121 = pneg %p77
      $region18: #{tpu_custom_call.1} parent=11 // pred_check_branch
        %123 = sbr.rel (%p121) target = $region20
      $region19: #{tpu_custom_call.1} parent=11 // pred_region
        _
      $region20: #{tpu_custom_call.1} parent=11 // pred_fallthru
        _
    $region12: #{tpu_custom_call.1} parent=5 // pred_fallthru
      _
    %p124 = scmp.lt.s32.totalorder %s9, 2
    // Predicated region
    $region21: #{tpu_custom_call.1} parent=5 // pred_check
      %p125 = pneg %p124
    $region22: #{tpu_custom_call.1} parent=5 // pred_check_branch
      %127 = sbr.rel (%p125) target = $region24
    $region23: #{tpu_custom_call.1} parent=5 // pred_region
      // Predicated region
      $region25: #{tpu_custom_call.1} parent=23 // pred_check
        %p128 = pneg %p29
      $region26: #{tpu_custom_call.1} parent=23 // pred_check_branch
        %130 = sbr.rel (%p128) target = $region28
      $region27: #{tpu_custom_call.1} parent=23 // pred_region
        %s131 = smul.u32 32, %s9
        %p132 = scmp.lt.s32.totalorder %s131, 63
        %s133 = scalar_select %p132, %s131, 63
        %s134 = smul.addr %s133, 4
        %s135 = scalar_lea.vmem %s0, %s134
        %s136 = smul.u32 32, %s9
      $region28: #{tpu_custom_call.1} parent=23 // pred_fallthru
        _
    $region24: #{tpu_custom_call.1} parent=5 // pred_fallthru
      _
    %p137 = scmp.le.s32.totalorder 1, %s9
    %p138 = scmp.lt.s32.totalorder %s9, 3
    %p139 = pnand %p137, %p138
    %p140 = pneg %p139
    // Predicated region
    $region29: #{tpu_custom_call.1} parent=5 // pred_check
      _
    $region30: #{tpu_custom_call.1} parent=5 // pred_check_branch
      %142 = sbr.rel (%p139) target = $region32
    $region31: #{tpu_custom_call.1} parent=5 // pred_region
      %s143 = ssub.s32 %s9, 1
      %s144 = smul.u32 32, %s14
      %p145 = scmp.lt.s32.totalorder %s144, 63
      %s146 = scalar_select %p145, %s144, 63
      %s147 = smul.addr %s146, 4
      %s148 = scalar_lea.vmem %s0, %s147
      %p149 = pneg %p35
      %p150 = pneg %p32
      %p151 = pneg %p56
      %p152 = pneg %p53
      %p153 = pneg %p77
      %p154 = pneg %p74
      %p155 = pneg %p103
      %p156 = pneg %p100
      %s157 = smul.u32 32, %s14
      %p158 = scmp.lt.s32.totalorder %s157, 63
      %s159 = scalar_select %p158, %s157, 63
      %s160 = smul.addr %s159, 8
      %s161 = scalar_lea.vmem %s3, %s160
      %s162 = smul.u32 32, %s14
      %p163 = scmp.lt.s32.totalorder %s162, 63
      %s164 = scalar_select %p163, %s162, 63
      %s165 = smul.addr %s164, 4
      %s166 = scalar_lea.vmem %s0, %s165
      %s167 = smul.u32 32, %s14
      %s168 = smul.u32 32, %s14
      %p169 = scmp.lt.s32.totalorder %s168, 63
      %s170 = scalar_select %p169, %s168, 63
      %s171 = smul.addr %s170, 8
      %s172 = scalar_lea.vmem %s3, %s171
      %s173 = smul.u32 32, %s14
      %v175 = vld [vmem:[%s166] sm:$0xf]
      %v176 = vld [vmem:[%s166 + $0x4] sm:$0xf]
      %v177 = vld [vmem:[%s166 + $0x8] sm:$0xf]
      %v178 = vld [vmem:[%s166 + $0xc] sm:$0xf]
      %v179 = vld [vmem:[%s166 + $0x10] sm:$0xf]
      %v180 = vld [vmem:[%s166 + $0x14] sm:$0xf]
      %v181 = vld [vmem:[%s166 + $0x18] sm:$0xf]
      %v182 = vld [vmem:[%s166 + $0x1c] sm:$0xf]
      %v183 = vld [vmem:[%s166 + $0x20] sm:$0xf]
      %v184 = vld [vmem:[%s166 + $0x24] sm:$0xf]
      %v185 = vld [vmem:[%s166 + $0x28] sm:$0xf]
      %v186 = vld [vmem:[%s166 + $0x2c] sm:$0xf]
      %v187 = vld [vmem:[%s166 + $0x30] sm:$0xf]
      %v188 = vld [vmem:[%s166 + $0x34] sm:$0xf]
      %v189 = vld [vmem:[%s166 + $0x38] sm:$0xf]
      %v190 = vld [vmem:[%s166 + $0x3c] sm:$0xf]
      %v191 = vld [vmem:[%s166 + $0x40] sm:$0xf]
      %v192 = vld [vmem:[%s166 + $0x44] sm:$0xf]
      %v193 = vld [vmem:[%s166 + $0x48] sm:$0xf]
      %v194 = vld [vmem:[%s166 + $0x4c] sm:$0xf]
      %v195 = vld [vmem:[%s166 + $0x50] sm:$0xf]
      %v196 = vld [vmem:[%s166 + $0x54] sm:$0xf]
      %v197 = vld [vmem:[%s166 + $0x58] sm:$0xf]
      %v198 = vld [vmem:[%s166 + $0x5c] sm:$0xf]
      %v199 = vld [vmem:[%s166 + $0x60] sm:$0xf]
      %v200 = vld [vmem:[%s166 + $0x64] sm:$0xf]
      %v201 = vld [vmem:[%s166 + $0x68] sm:$0xf]
      %v202 = vld [vmem:[%s166 + $0x6c] sm:$0xf]
      %v203 = vld [vmem:[%s166 + $0x70] sm:$0xf]
      %v204 = vld [vmem:[%s166 + $0x74] sm:$0xf]
      %v205 = vld [vmem:[%s166 + $0x78] sm:$0xf]
      %v206 = vld [vmem:[%s166 + $0x7c] sm:$0xf]
      %v207 = vld [vmem:[%s1] sm:$0xf]
      %v208 = vld [vmem:[%s1 + $0x4] sm:$0xf]
      %v209 = vld [vmem:[%s1 + $0x8] sm:$0xf]
      %v210 = vld [vmem:[%s1 + $0xc] sm:$0x3]
      %v211 = vld [vmem:[%s2] sm:$0x1]
      %v213 = vperm.slane %v211, 0
      %v247 = vunpack.c.l.b16 %v175
      %v248 = vunpack.c.l.b16 %v176
      %v249 = vunpack.c.l.b16 %v177
      %v250 = vunpack.c.l.b16 %v178
      %v251 = vunpack.c.l.b16 %v179
      %v252 = vunpack.c.l.b16 %v180
      %v253 = vunpack.c.l.b16 %v181
      %v254 = vunpack.c.l.b16 %v182
      %v255 = vunpack.c.l.b16 %v183
      %v256 = vunpack.c.l.b16 %v184
      %v257 = vunpack.c.l.b16 %v185
      %v258 = vunpack.c.l.b16 %v186
      %v259 = vunpack.c.l.b16 %v187
      %v260 = vunpack.c.l.b16 %v188
      %v261 = vunpack.c.l.b16 %v189
      %v262 = vunpack.c.l.b16 %v190
      %v263 = vunpack.c.l.b16 %v191
      %v264 = vunpack.c.l.b16 %v192
      %v265 = vunpack.c.l.b16 %v193
      %v266 = vunpack.c.l.b16 %v194
      %v267 = vunpack.c.l.b16 %v195
      %v268 = vunpack.c.l.b16 %v196
      %v269 = vunpack.c.l.b16 %v197
      %v270 = vunpack.c.l.b16 %v198
      %v271 = vunpack.c.l.b16 %v199
      %v272 = vunpack.c.l.b16 %v200
      %v273 = vunpack.c.l.b16 %v201
      %v274 = vunpack.c.l.b16 %v202
      %v275 = vunpack.c.l.b16 %v203
      %v276 = vunpack.c.l.b16 %v204
      %v277 = vunpack.c.l.b16 %v205
      %v278 = vunpack.c.l.b16 %v206
      %v279 = vpack.c.b16 %v248, %v247
      %v280 = vpack.c.b16 %v250, %v249
      %v281 = vpack.c.b16 %v252, %v251
      %v282 = vpack.c.b16 %v254, %v253
      %v283 = vpack.c.b16 %v256, %v255
      %v284 = vpack.c.b16 %v258, %v257
      %v285 = vpack.c.b16 %v260, %v259
      %v286 = vpack.c.b16 %v262, %v261
      %v287 = vpack.c.b16 %v264, %v263
      %v288 = vpack.c.b16 %v266, %v265
      %v289 = vpack.c.b16 %v268, %v267
      %v290 = vpack.c.b16 %v270, %v269
      %v291 = vpack.c.b16 %v272, %v271
      %v292 = vpack.c.b16 %v274, %v273
      %v293 = vpack.c.b16 %v276, %v275
      %v294 = vpack.c.b16 %v278, %v277
      %v299 = vunpack.c.l.b16 %v207
      %v300 = vunpack.c.l.b16 %v208
      %v301 = vunpack.c.l.b16 %v209
      %v302 = vunpack.c.l.b16 %v210
      %v303 = vpack.c.b16 %v300, %v299
      %v304 = vpack.c.b16 %v302, %v301
      %vm306 = vcmask 220160
      %v308 = vsel %vm306, %v279, 0
      %v311 = vsel %vm306, %v280, 0
      %v314 = vsel %vm306, %v281, 0
      %v317 = vsel %vm306, %v282, 0
      %v320 = vsel %vm306, %v283, 0
      %v323 = vsel %vm306, %v284, 0
      %v326 = vsel %vm306, %v285, 0
      %v329 = vsel %vm306, %v286, 0
      %v332 = vsel %vm306, %v287, 0
      %v335 = vsel %vm306, %v288, 0
      %v338 = vsel %vm306, %v289, 0
      %v341 = vsel %vm306, %v290, 0
      %v344 = vsel %vm306, %v291, 0
      %v347 = vsel %vm306, %v292, 0
      %v350 = vsel %vm306, %v293, 0
      %v353 = vsel %vm306, %v294, 0
      %vm355 = vcmask 1044480
      %vm356 = vcmask 1045504
      %v357 = vsel %vm355, 4294967295, 65535
      %v358 = vsel %vm356, %v357, 0
      %v360 = vand.u32 %v304, %v358
      %362 = vmatpush.bf16.msra.mxu0 0
      %363 = vmatpush.bf16.msra.mxu0 0
      %364 = vmatpush.bf16.msra.mxu0 0
      %365 = vmatpush.bf16.msra.mxu0 0
      %366 = vmatpush.bf16.msra.mxu0 0
      %367 = vmatpush.bf16.msra.mxu0 0
      %368 = vmatpush.bf16.msra.mxu0 %v360
      %369 = vmatpush.bf16.msra.mxu0 %v303
      %370 = vmatmul.bf16.gmra.mxu0 %v308
      %v371 = vpop.f32.mrf.mxu0
      %v372 = vadd.f32 %v213, %v371
      %v373 = vpop.f32.mrf.mxu0
      %v374 = vadd.f32 %v213, %v373
      %375 = vmatmul.bf16.gmra.mxu0 %v311
      %v376 = vpop.f32.mrf.mxu0
      %v377 = vadd.f32 %v213, %v376
      %v378 = vpop.f32.mrf.mxu0
      %v379 = vadd.f32 %v213, %v378
      %380 = vmatmul.bf16.gmra.mxu0 %v314
      %v381 = vpop.f32.mrf.mxu0
      %v382 = vadd.f32 %v213, %v381
      %v383 = vpop.f32.mrf.mxu0
      %v384 = vadd.f32 %v213, %v383
      %385 = vmatmul.bf16.gmra.mxu0 %v317
      %v386 = vpop.f32.mrf.mxu0
      %v387 = vadd.f32 %v213, %v386
      %v388 = vpop.f32.mrf.mxu0
      %v389 = vadd.f32 %v213, %v388
      %390 = vmatmul.bf16.gmra.mxu0 %v320
      %v391 = vpop.f32.mrf.mxu0
      %v392 = vadd.f32 %v213, %v391
      %v393 = vpop.f32.mrf.mxu0
      %v394 = vadd.f32 %v213, %v393
      %395 = vmatmul.bf16.gmra.mxu0 %v323
      %v396 = vpop.f32.mrf.mxu0
      %v397 = vadd.f32 %v213, %v396
      %v398 = vpop.f32.mrf.mxu0
      %v399 = vadd.f32 %v213, %v398
      %400 = vmatmul.bf16.gmra.mxu0 %v326
      %v401 = vpop.f32.mrf.mxu0
      %v402 = vadd.f32 %v213, %v401
      %v403 = vpop.f32.mrf.mxu0
      %v404 = vadd.f32 %v213, %v403
      %405 = vmatmul.bf16.gmra.mxu0 %v329
      %v406 = vpop.f32.mrf.mxu0
      %v407 = vadd.f32 %v213, %v406
      %v408 = vpop.f32.mrf.mxu0
      %v409 = vadd.f32 %v213, %v408
      %410 = vmatmul.bf16.gmra.mxu0 %v332
      %v411 = vpop.f32.mrf.mxu0
      %v412 = vadd.f32 %v213, %v411
      %v413 = vpop.f32.mrf.mxu0
      %v414 = vadd.f32 %v213, %v413
      %415 = vmatmul.bf16.gmra.mxu0 %v335
      %v416 = vpop.f32.mrf.mxu0
      %v417 = vadd.f32 %v213, %v416
      %v418 = vpop.f32.mrf.mxu0
      %v419 = vadd.f32 %v213, %v418
      %420 = vmatmul.bf16.gmra.mxu0 %v338
      %v421 = vpop.f32.mrf.mxu0
      %v422 = vadd.f32 %v213, %v421
      %v423 = vpop.f32.mrf.mxu0
      %v424 = vadd.f32 %v213, %v423
      %425 = vmatmul.bf16.gmra.mxu0 %v341
      %v426 = vpop.f32.mrf.mxu0
      %v427 = vadd.f32 %v213, %v426
      %v428 = vpop.f32.mrf.mxu0
      %v429 = vadd.f32 %v213, %v428
      %430 = vmatmul.bf16.gmra.mxu0 %v344
      %v431 = vpop.f32.mrf.mxu0
      %v432 = vadd.f32 %v213, %v431
      %v433 = vpop.f32.mrf.mxu0
      %v434 = vadd.f32 %v213, %v433
      %435 = vmatmul.bf16.gmra.mxu0 %v347
      %v436 = vpop.f32.mrf.mxu0
      %v437 = vadd.f32 %v213, %v436
      %v438 = vpop.f32.mrf.mxu0
      %v439 = vadd.f32 %v213, %v438
      %440 = vmatmul.bf16.gmra.mxu0 %v350
      %v441 = vpop.f32.mrf.mxu0
      %v442 = vadd.f32 %v213, %v441
      %v443 = vpop.f32.mrf.mxu0
      %v444 = vadd.f32 %v213, %v443
      %445 = vmatmul.bf16.gmra.mxu0 %v353
      %v446 = vpop.f32.mrf.mxu0
      %v447 = vadd.f32 %v213, %v446
      %v448 = vpop.f32.mrf.mxu0
      %v449 = vadd.f32 %v213, %v448
      %450 = vdwg.mxu0
      %vm451 = vcmask 523264
      %452 = vst.msk [vmem:[%s172] sm:$0xff] %vm451, %v372
      %453 = vst.msk [vmem:[%s172 + $0x8] sm:$0xff] %vm451, %v374
      %454 = vst.msk [vmem:[%s172 + $0x10] sm:$0xff] %vm451, %v377
      %455 = vst.msk [vmem:[%s172 + $0x18] sm:$0xff] %vm451, %v379
      %456 = vst.msk [vmem:[%s172 + $0x20] sm:$0xff] %vm451, %v382
      %457 = vst.msk [vmem:[%s172 + $0x28] sm:$0xff] %vm451, %v384
      %458 = vst.msk [vmem:[%s172 + $0x30] sm:$0xff] %vm451, %v387
      %459 = vst.msk [vmem:[%s172 + $0x38] sm:$0xff] %vm451, %v389
      %460 = vst.msk [vmem:[%s172 + $0x40] sm:$0xff] %vm451, %v392
      %461 = vst.msk [vmem:[%s172 + $0x48] sm:$0xff] %vm451, %v394
      %462 = vst.msk [vmem:[%s172 + $0x50] sm:$0xff] %vm451, %v397
      %463 = vst.msk [vmem:[%s172 + $0x58] sm:$0xff] %vm451, %v399
      %464 = vst.msk [vmem:[%s172 + $0x60] sm:$0xff] %vm451, %v402
      %465 = vst.msk [vmem:[%s172 + $0x68] sm:$0xff] %vm451, %v404
      %466 = vst.msk [vmem:[%s172 + $0x70] sm:$0xff] %vm451, %v407
      %467 = vst.msk [vmem:[%s172 + $0x78] sm:$0xff] %vm451, %v409
      %468 = vst.msk [vmem:[%s172 + $0x80] sm:$0xff] %vm451, %v412
      %469 = vst.msk [vmem:[%s172 + $0x88] sm:$0xff] %vm451, %v414
      %470 = vst.msk [vmem:[%s172 + $0x90] sm:$0xff] %vm451, %v417
      %471 = vst.msk [vmem:[%s172 + $0x98] sm:$0xff] %vm451, %v419
      %472 = vst.msk [vmem:[%s172 + $0xa0] sm:$0xff] %vm451, %v422
      %473 = vst.msk [vmem:[%s172 + $0xa8] sm:$0xff] %vm451, %v424
      %474 = vst.msk [vmem:[%s172 + $0xb0] sm:$0xff] %vm451, %v427
      %475 = vst.msk [vmem:[%s172 + $0xb8] sm:$0xff] %vm451, %v429
      %476 = vst.msk [vmem:[%s172 + $0xc0] sm:$0xff] %vm451, %v432
      %477 = vst.msk [vmem:[%s172 + $0xc8] sm:$0xff] %vm451, %v434
      %478 = vst.msk [vmem:[%s172 + $0xd0] sm:$0xff] %vm451, %v437
      %479 = vst.msk [vmem:[%s172 + $0xd8] sm:$0xff] %vm451, %v439
      %480 = vst.msk [vmem:[%s172 + $0xe0] sm:$0xff] %vm451, %v442
      %481 = vst.msk [vmem:[%s172 + $0xe8] sm:$0xff] %vm451, %v444
      %482 = vst.msk [vmem:[%s172 + $0xf0] sm:$0xff] %vm451, %v447
      %483 = vst.msk [vmem:[%s172 + $0xf8] sm:$0xff] %vm451, %v449
      %s484 = smul.u32 32, %s14
      %p485 = scmp.lt.s32.totalorder %s484, 63
      %s486 = scalar_select %p485, %s484, 63
      %s487 = smul.addr %s486, 8
      %s488 = scalar_lea.vmem %s3, %s487
      // Predicated region
      $region33: #{tpu_custom_call.1} parent=31 // pred_check
        %p489 = pneg %p100
      $region34: #{tpu_custom_call.1} parent=31 // pred_check_branch
        %491 = sbr.rel (%p489) target = $region36
      $region35: #{tpu_custom_call.1} parent=31 // pred_region
        %s492 = smul.u32 32, %s14
      $region36: #{tpu_custom_call.1} parent=31 // pred_fallthru
        _
    $region32: #{tpu_custom_call.1} parent=5 // pred_fallthru
      _
    %p493 = scmp.le.s32.totalorder 2, %s9
    // Predicated region
    $region37: #{tpu_custom_call.1} parent=5 // pred_check
      %p494 = pneg %p493
    $region38: #{tpu_custom_call.1} parent=5 // pred_check_branch
      %496 = sbr.rel (%p494) target = $region40
    $region39: #{tpu_custom_call.1} parent=5 // pred_region
      %s497 = ssub.s32 %s9, 2
      // Predicated region
      $region41: #{tpu_custom_call.1} parent=39 // pred_check
        %p498 = pneg %p106
      $region42: #{tpu_custom_call.1} parent=39 // pred_check_branch
        %500 = sbr.rel (%p498) target = $region44
      $region43: #{tpu_custom_call.1} parent=39 // pred_region
        %s501 = smul.u32 32, %s15
        %p502 = scmp.lt.s32.totalorder %s501, 63
        %s503 = scalar_select %p502, %s501, 63
        %s504 = smul.addr %s503, 8
        %s505 = scalar_lea.vmem %s3, %s504
      $region44: #{tpu_custom_call.1} parent=39 // pred_fallthru
        _
    $region40: #{tpu_custom_call.1} parent=5 // pred_fallthru
      _
  $region6: #{tpu_custom_call.1} parent=0 // loop_footer
    %s13 = sadd.s32 1, %s9
  $region7: #{tpu_custom_call.1} parent=0 // loop_footer_branch
    %8 = sbr.rel target = $region3
  $region8: #{tpu_custom_call.1} parent=0 // loop_exit
    _

</llo_original>
